<compile_context>
chip_gen: v5e
topology: v5e:2x2
jax: 0.10.0
libtpu: 0.0.40
codegen_flags: <defaults>
</compile_context>

<pallas_src>
import jax
import jax.numpy as jnp
import numpy as np
from jax.experimental import pallas as pl
from jax.experimental.pallas import tpu as pltpu

POOL = 4  # nn.AvgPool2d(4)


def _l_spa_kernel(org_ref, enh_ref, out_ref):
    Bt, C, H, W = org_ref.shape
    _, Hp, Wp = out_ref.shape
    f32 = jnp.float32

    # ---- constants built in-register (no HBM traffic, once per grid step) ---
    # Pooling matrices: d = ph @ (sum_c diff) @ pwt  == avgpool4(mean_c diff).
    # The 1/C of the channel mean is folded into ph.
    pr = jax.lax.broadcasted_iota(jnp.int32, (Hp, H), 0)
    hr = jax.lax.broadcasted_iota(jnp.int32, (Hp, H), 1)
    ph = jnp.where((hr >= pr * POOL) & (hr < pr * POOL + POOL),
                   1.0 / (POOL * C), 0.0).astype(f32)          # (Hp, H)
    wr = jax.lax.broadcasted_iota(jnp.int32, (W, Wp), 0)
    wc = jax.lax.broadcasted_iota(jnp.int32, (W, Wp), 1)
    pwt = jnp.where((wr >= wc * POOL) & (wr < wc * POOL + POOL),
                    1.0 / POOL, 0.0).astype(f32)               # (W, Wp)

    # +-1 shift matrices with zero boundary (== 3x3 conv with zero padding).
    ri = jax.lax.broadcasted_iota(jnp.int32, (Hp, Hp), 0)
    rj = jax.lax.broadcasted_iota(jnp.int32, (Hp, Hp), 1)
    aup = (rj == ri - 1).astype(f32)   # (aup @ d)[y, x] = d[y-1, x]
    adn = (rj == ri + 1).astype(f32)   # (adn @ d)[y, x] = d[y+1, x]
    ci = jax.lax.broadcasted_iota(jnp.int32, (Wp, Wp), 0)
    cj = jax.lax.broadcasted_iota(jnp.int32, (Wp, Wp), 1)
    blf = (ci == cj - 1).astype(f32)   # (d @ blf)[y, x] = d[y, x-1]
    brt = (ci == cj + 1).astype(f32)   # (d @ brt)[y, x] = d[y, x+1]

    # TODO(synk): weight_diff / E_1 in the PyTorch forward are dead code (they
    # never feed the returned E) and are intentionally not computed.

    # ---- per-image work: fori_loop keeps live ranges bounded ----------------
    def per_image(bi, carry):
        # Channel reduction without materializing a (C,H,W) f32 difference:
        # sum_c org - sum_c enh, one (H,W) f32 tile live at a time.
        dsum = (jnp.sum(org_ref[bi], axis=0, dtype=f32)
                - jnp.sum(enh_ref[bi], axis=0, dtype=f32))     # (H, W)
        d = jnp.dot(jnp.dot(ph, dsum, preferred_element_type=f32),
                    pwt, preferred_element_type=f32)           # (Hp, Wp)

        # (D_org_X - D_enh_X) == d - neighbor_X(d)   (linearity of the convs)
        left = d - jnp.dot(d, blf, preferred_element_type=f32)
        right = d - jnp.dot(d, brt, preferred_element_type=f32)
        up = d - jnp.dot(aup, d, preferred_element_type=f32)
        down = d - jnp.dot(adn, d, preferred_element_type=f32)

        out_ref[bi] = (left * left + right * right
                       + up * up + down * down).astype(out_ref.dtype)
        return carry

    jax.lax.fori_loop(0, Bt, per_image, 0, unroll=(Bt <= 4))


def _tpu_vmem_capacity_bytes():
    """Per-TensorCore VMEM capacity; conservative 64 MiB fallback (fits all gens)."""
    try:
        return int(pltpu.get_tpu_info().vmem_capacity_bytes)
    except Exception:
        return 64 * 1024 * 1024


def _tpu_num_tensorcores():
    """2 on v7x-class chips (grid is sharded across cores), else 1."""
    try:
        kind = jax.devices()[0].device_kind.lower()
    except Exception:
        return 2  # conservative: only affects grid-evenness preference
    return 2 if "7" in kind else 1


def _pick_block_b(B, max_bt, num_cores):
    """Largest divisor of B within the VMEM budget, with a grid shape suited
    to the number of TensorCores (even step count preferred on 2-core chips)."""
    divisors = [d for d in range(1, B + 1) if B % d == 0 and d <= max_bt]
    if not divisors:
        return 1
    if num_cores <= 1:
        return max(divisors)                       # fewest, biggest steps
    even = [d for d in divisors if (B // d) % 2 == 0]
    if even:
        return max(even)                           # both cores get equal steps
    multi = [d for d in divisors if (B // d) >= 2]
    if multi:
        return max(multi)
    return max(divisors)


def l_spa(org, enh):
    B, C, H, W = org.shape
    assert enh.shape == org.shape
    assert H % POOL == 0 and W % POOL == 0
    Hp, Wp = H // POOL, W // POOL
    f32 = jnp.float32

    itemsize = jnp.dtype(org.dtype).itemsize
    per_image_bytes = C * H * W * itemsize

    vmem_cap = _tpu_vmem_capacity_bytes()
    num_cores = _tpu_num_tensorcores()

    # 2 inputs x 2 pipeline buffers: keep the double-buffered input working set
    # at ~75% of this generation's VMEM (≈96 MiB on v5e/v6e, ≈48 MiB on v7x).
    inputs_budget = (vmem_cap * 3) // 4
    max_bt = max(1, inputs_budget // (4 * per_image_bytes))
    bt = _pick_block_b(B, max_bt, num_cores)
    grid = (B // bt,)

    # vmem_limit covers: 2x2 input buffers + double-buffered output blocks +
    # in-kernel f32 temporaries + constant pooling/shift matrices + margin,
    # clipped to ~90% of physical VMEM for this generation.
    const_bytes = (Hp * H + W * Wp + 2 * Hp * Hp + 2 * Wp * Wp) * 4
    temp_bytes = bt * H * W * 4 + 8 * bt * Hp * Wp * 4
    out_bytes = 2 * bt * Hp * Wp * 4
    vmem_needed = (4 * bt * per_image_bytes + out_bytes + temp_bytes
                   + const_bytes + (2 << 20))
    vmem_limit = int(min(max(vmem_needed, 32 << 20), (vmem_cap * 9) // 10))

    out = pl.pallas_call(
        _l_spa_kernel,
        out_shape=jax.ShapeDtypeStruct((B, Hp, Wp), f32),
        grid_spec=pltpu.PrefetchScalarGridSpec(
            num_scalar_prefetch=0,
            grid=grid,
            in_specs=[
                pl.BlockSpec((bt, C, H, W), lambda b: (b, 0, 0, 0)),
                pl.BlockSpec((bt, C, H, W), lambda b: (b, 0, 0, 0)),
            ],
            out_specs=pl.BlockSpec((bt, Hp, Wp), lambda b: (b, 0, 0)),
        ),
        compiler_params=pltpu.CompilerParams(
            dimension_semantics=("parallel",),
            vmem_limit_bytes=vmem_limit),
    )(org, enh)

    # Restore the PyTorch (B, 1, Hp, Wp) layout (free reshape outside the kernel).
    return out.reshape(B, 1, Hp, Wp)


def _reference(org, enh):
    # Pure-JAX reference matching the PyTorch forward semantics.
    B, C, H, W = org.shape
    Hp, Wp = H // POOL, W // POOL
    om = jnp.mean(org, axis=1, keepdims=True)
    em = jnp.mean(enh, axis=1, keepdims=True)
    pool = lambda x: x.reshape(B, 1, Hp, POOL, Wp, POOL).mean(axis=(3, 5))
    op, ep = pool(om), pool(em)
    d = op - ep
    pad = jnp.pad(d, ((0, 0), (0, 0), (1, 1), (1, 1)))
    left = pad[:, :, 1:-1, :-2]
    right = pad[:, :, 1:-1, 2:]
    up = pad[:, :, :-2, 1:-1]
    down = pad[:, :, 2:, 1:-1]
    return (d - left) ** 2 + (d - right) ** 2 + (d - up) ** 2 + (d - down) ** 2


if __name__ == "__main__":
    key = jax.random.PRNGKey(0)
    k1, k2 = jax.random.split(key)
    B, C, H, W = 2, 4, 16, 16
    org = jax.random.uniform(k1, (B, C, H, W), dtype=jnp.float32)
    enh = jax.random.uniform(k2, (B, C, H, W), dtype=jnp.float32)

    e = l_spa(org, enh)
    e = jax.block_until_ready(e)

    ref = _reference(org, enh)
    assert e.shape == (B, 1, H // POOL, W // POOL)
    np.testing.assert_allclose(np.asarray(e), np.asarray(ref),
                               rtol=1e-5, atol=1e-6)
    print("KERNEL_OK")
</pallas_src>

<mosaic_0001>
module attributes {stable_mosaic.version = 11 : i64} {
  func.func @_l_spa_kernel(%arg0: i32, %arg1: memref<2x4x16x16xf32, #tpu.memory_space<vmem>>, %arg2: memref<2x4x16x16xf32, #tpu.memory_space<vmem>>, %arg3: memref<2x4x4xf32, #tpu.memory_space<vmem>>) attributes {dimension_semantics = [#tpu.dimension_semantics<parallel>], iteration_bounds = array<i64: 1>, scalar_prefetch = 0 : i64, scratch_operands = 0 : i64, tpu.core_type = #tpu.core_type<tc>, window_params = [{transform_indices = @transform_0, window_bounds = array<i64: 2, 4, 16, 16>}, {transform_indices = @transform_1, window_bounds = array<i64: 2, 4, 16, 16>}, {transform_indices = @transform_2, window_bounds = array<i64: 2, 4, 4>}]} {
    %0 = tpu.iota {dimensions = array<i32: 0>} : vector<4x16xi32>
    %1 = tpu.iota {dimensions = array<i32: 1>} : vector<4x16xi32>
    %c4_i32 = arith.constant 4 : i32
    %2 = vector.broadcast %c4_i32 : i32 to vector<4x16xi32>
    %3 = arith.muli %0, %2 : vector<4x16xi32>
    %4 = arith.cmpi sge, %1, %3 : vector<4x16xi32>
    %c4_i32_0 = arith.constant 4 : i32
    %5 = vector.broadcast %c4_i32_0 : i32 to vector<4x16xi32>
    %6 = arith.muli %0, %5 : vector<4x16xi32>
    %c4_i32_1 = arith.constant 4 : i32
    %7 = vector.broadcast %c4_i32_1 : i32 to vector<4x16xi32>
    %8 = arith.addi %6, %7 : vector<4x16xi32>
    %9 = arith.cmpi slt, %1, %8 : vector<4x16xi32>
    %10 = arith.andi %4, %9 : vector<4x16xi1>
    %cst = arith.constant 6.250000e-02 : f32
    %cst_2 = arith.constant 0.000000e+00 : f32
    %11 = vector.broadcast %cst : f32 to vector<4x16xf32>
    %12 = vector.broadcast %cst_2 : f32 to vector<4x16xf32>
    %13 = arith.select %10, %11, %12 : vector<4x16xi1>, vector<4x16xf32>
    %14 = tpu.iota {dimensions = array<i32: 0>} : vector<16x4xi32>
    %15 = tpu.iota {dimensions = array<i32: 1>} : vector<16x4xi32>
    %c4_i32_3 = arith.constant 4 : i32
    %16 = vector.broadcast %c4_i32_3 : i32 to vector<16x4xi32>
    %17 = arith.muli %15, %16 : vector<16x4xi32>
    %18 = arith.cmpi sge, %14, %17 : vector<16x4xi32>
    %c4_i32_4 = arith.constant 4 : i32
    %19 = vector.broadcast %c4_i32_4 : i32 to vector<16x4xi32>
    %20 = arith.muli %15, %19 : vector<16x4xi32>
    %c4_i32_5 = arith.constant 4 : i32
    %21 = vector.broadcast %c4_i32_5 : i32 to vector<16x4xi32>
    %22 = arith.addi %20, %21 : vector<16x4xi32>
    %23 = arith.cmpi slt, %14, %22 : vector<16x4xi32>
    %24 = arith.andi %18, %23 : vector<16x4xi1>
    %cst_6 = arith.constant 2.500000e-01 : f32
    %cst_7 = arith.constant 0.000000e+00 : f32
    %25 = vector.broadcast %cst_6 : f32 to vector<16x4xf32>
    %26 = vector.broadcast %cst_7 : f32 to vector<16x4xf32>
    %27 = arith.select %24, %25, %26 : vector<16x4xi1>, vector<16x4xf32>
    %28 = tpu.iota {dimensions = array<i32: 0>} : vector<4x4xi32>
    %29 = tpu.iota {dimensions = array<i32: 1>} : vector<4x4xi32>
    %c1_i32 = arith.constant 1 : i32
    %30 = vector.broadcast %c1_i32 : i32 to vector<4x4xi32>
    %31 = arith.subi %28, %30 : vector<4x4xi32>
    %32 = arith.cmpi eq, %29, %31 : vector<4x4xi32>
    %33 = arith.extui %32 : vector<4x4xi1> to vector<4x4xi32>
    %34 = arith.sitofp %33 : vector<4x4xi32> to vector<4x4xf32>
    %c1_i32_8 = arith.constant 1 : i32
    %35 = vector.broadcast %c1_i32_8 : i32 to vector<4x4xi32>
    %36 = arith.addi %28, %35 : vector<4x4xi32>
    %37 = arith.cmpi eq, %29, %36 : vector<4x4xi32>
    %38 = arith.extui %37 : vector<4x4xi1> to vector<4x4xi32>
    %39 = arith.sitofp %38 : vector<4x4xi32> to vector<4x4xf32>
    %40 = tpu.iota {dimensions = array<i32: 0>} : vector<4x4xi32>
    %41 = tpu.iota {dimensions = array<i32: 1>} : vector<4x4xi32>
    %c1_i32_9 = arith.constant 1 : i32
    %42 = vector.broadcast %c1_i32_9 : i32 to vector<4x4xi32>
    %43 = arith.subi %41, %42 : vector<4x4xi32>
    %44 = arith.cmpi eq, %40, %43 : vector<4x4xi32>
    %45 = arith.extui %44 : vector<4x4xi1> to vector<4x4xi32>
    %46 = arith.sitofp %45 : vector<4x4xi32> to vector<4x4xf32>
    %c1_i32_10 = arith.constant 1 : i32
    %47 = vector.broadcast %c1_i32_10 : i32 to vector<4x4xi32>
    %48 = arith.addi %41, %47 : vector<4x4xi32>
    %49 = arith.cmpi eq, %40, %48 : vector<4x4xi32>
    %50 = arith.extui %49 : vector<4x4xi1> to vector<4x4xi32>
    %51 = arith.sitofp %50 : vector<4x4xi32> to vector<4x4xf32>
    %c0_i32 = arith.constant 0 : i32
    %52 = arith.index_cast %c0_i32 : i32 to index
    %c0 = arith.constant 0 : index
    %c0_11 = arith.constant 0 : index
    %c0_12 = arith.constant 0 : index
    %53 = vector.load %arg1[%52, %c0, %c0_11, %c0_12] : memref<2x4x16x16xf32, #tpu.memory_space<vmem>>, vector<1x4x16x16xf32>
    %54 = vector.shape_cast %53 : vector<1x4x16x16xf32> to vector<4x16x16xf32>
    %cst_13 = arith.constant dense<0.000000e+00> : vector<16x16xf32>
    %55 = vector.multi_reduction <add>, %54, %cst_13 [0] : vector<4x16x16xf32> to vector<16x16xf32>
    %56 = arith.index_cast %c0_i32 : i32 to index
    %c0_14 = arith.constant 0 : index
    %c0_15 = arith.constant 0 : index
    %c0_16 = arith.constant 0 : index
    %57 = vector.load %arg2[%56, %c0_14, %c0_15, %c0_16] : memref<2x4x16x16xf32, #tpu.memory_space<vmem>>, vector<1x4x16x16xf32>
    %58 = vector.shape_cast %57 : vector<1x4x16x16xf32> to vector<4x16x16xf32>
    %cst_17 = arith.constant dense<0.000000e+00> : vector<16x16xf32>
    %59 = vector.multi_reduction <add>, %58, %cst_17 [0] : vector<4x16x16xf32> to vector<16x16xf32>
    %60 = arith.subf %55, %59 : vector<16x16xf32>
    %cst_18 = arith.constant dense<0.000000e+00> : vector<4x16xf32>
    %61 = tpu.matmul %13, %60, %cst_18 {dimension_numbers = #tpu.dot_dimension_numbers<[1], [0], [0], [1], [0, 0, 1, 1], [], []>} : vector<4x16xf32>, vector<16x16xf32>, vector<4x16xf32> -> vector<4x16xf32>
    %cst_19 = arith.constant dense<0.000000e+00> : vector<4x4xf32>
    %62 = tpu.matmul %61, %27, %cst_19 {dimension_numbers = #tpu.dot_dimension_numbers<[1], [0], [0], [1], [0, 0, 1, 1], [], []>} : vector<4x16xf32>, vector<16x4xf32>, vector<4x4xf32> -> vector<4x4xf32>
    %cst_20 = arith.constant dense<0.000000e+00> : vector<4x4xf32>
    %63 = tpu.matmul %62, %46, %cst_20 {dimension_numbers = #tpu.dot_dimension_numbers<[1], [0], [0], [1], [0, 0, 1, 1], [], []>} : vector<4x4xf32>, vector<4x4xf32>, vector<4x4xf32> -> vector<4x4xf32>
    %64 = arith.subf %62, %63 : vector<4x4xf32>
    %cst_21 = arith.constant dense<0.000000e+00> : vector<4x4xf32>
    %65 = tpu.matmul %62, %51, %cst_21 {dimension_numbers = #tpu.dot_dimension_numbers<[1], [0], [0], [1], [0, 0, 1, 1], [], []>} : vector<4x4xf32>, vector<4x4xf32>, vector<4x4xf32> -> vector<4x4xf32>
    %66 = arith.subf %62, %65 : vector<4x4xf32>
    %cst_22 = arith.constant dense<0.000000e+00> : vector<4x4xf32>
    %67 = tpu.matmul %34, %62, %cst_22 {dimension_numbers = #tpu.dot_dimension_numbers<[1], [0], [0], [1], [0, 0, 1, 1], [], []>} : vector<4x4xf32>, vector<4x4xf32>, vector<4x4xf32> -> vector<4x4xf32>
    %68 = arith.subf %62, %67 : vector<4x4xf32>
    %cst_23 = arith.constant dense<0.000000e+00> : vector<4x4xf32>
    %69 = tpu.matmul %39, %62, %cst_23 {dimension_numbers = #tpu.dot_dimension_numbers<[1], [0], [0], [1], [0, 0, 1, 1], [], []>} : vector<4x4xf32>, vector<4x4xf32>, vector<4x4xf32> -> vector<4x4xf32>
    %70 = arith.subf %62, %69 : vector<4x4xf32>
    %71 = arith.mulf %64, %64 : vector<4x4xf32>
    %72 = arith.mulf %66, %66 : vector<4x4xf32>
    %73 = arith.addf %71, %72 : vector<4x4xf32>
    %74 = arith.mulf %68, %68 : vector<4x4xf32>
    %75 = arith.addf %73, %74 : vector<4x4xf32>
    %76 = arith.mulf %70, %70 : vector<4x4xf32>
    %77 = arith.addf %75, %76 : vector<4x4xf32>
    %78 = arith.index_cast %c0_i32 : i32 to index
    %c0_24 = arith.constant 0 : index
    %c0_25 = arith.constant 0 : index
    %79 = vector.load %arg3[%78, %c0_24, %c0_25] : memref<2x4x4xf32, #tpu.memory_space<vmem>>, vector<1x4x4xf32>
    %80 = vector.shape_cast %79 : vector<1x4x4xf32> to vector<4x4xf32>
    %81 = vector.shape_cast %77 : vector<4x4xf32> to vector<1x4x4xf32>
    tpu.vector_store %arg3[%78, %c0_24, %c0_25], %81 {strides = array<i32>} : memref<2x4x4xf32, #tpu.memory_space<vmem>>, vector<1x4x4xf32>,
    %c1_i32_26 = arith.constant 1 : i32
    %82 = arith.index_cast %c1_i32_26 : i32 to index
    %c0_27 = arith.constant 0 : index
    %c0_28 = arith.constant 0 : index
    %c0_29 = arith.constant 0 : index
    %83 = vector.load %arg1[%82, %c0_27, %c0_28, %c0_29] : memref<2x4x16x16xf32, #tpu.memory_space<vmem>>, vector<1x4x16x16xf32>
    %84 = vector.shape_cast %83 : vector<1x4x16x16xf32> to vector<4x16x16xf32>
    %cst_30 = arith.constant dense<0.000000e+00> : vector<16x16xf32>
    %85 = vector.multi_reduction <add>, %84, %cst_30 [0] : vector<4x16x16xf32> to vector<16x16xf32>
    %86 = arith.index_cast %c1_i32_26 : i32 to index
    %c0_31 = arith.constant 0 : index
    %c0_32 = arith.constant 0 : index
    %c0_33 = arith.constant 0 : index
    %87 = vector.load %arg2[%86, %c0_31, %c0_32, %c0_33] : memref<2x4x16x16xf32, #tpu.memory_space<vmem>>, vector<1x4x16x16xf32>
    %88 = vector.shape_cast %87 : vector<1x4x16x16xf32> to vector<4x16x16xf32>
    %cst_34 = arith.constant dense<0.000000e+00> : vector<16x16xf32>
    %89 = vector.multi_reduction <add>, %88, %cst_34 [0] : vector<4x16x16xf32> to vector<16x16xf32>
    %90 = arith.subf %85, %89 : vector<16x16xf32>
    %cst_35 = arith.constant dense<0.000000e+00> : vector<4x16xf32>
    %91 = tpu.matmul %13, %90, %cst_35 {dimension_numbers = #tpu.dot_dimension_numbers<[1], [0], [0], [1], [0, 0, 1, 1], [], []>} : vector<4x16xf32>, vector<16x16xf32>, vector<4x16xf32> -> vector<4x16xf32>
    %cst_36 = arith.constant dense<0.000000e+00> : vector<4x4xf32>
    %92 = tpu.matmul %91, %27, %cst_36 {dimension_numbers = #tpu.dot_dimension_numbers<[1], [0], [0], [1], [0, 0, 1, 1], [], []>} : vector<4x16xf32>, vector<16x4xf32>, vector<4x4xf32> -> vector<4x4xf32>
    %cst_37 = arith.constant dense<0.000000e+00> : vector<4x4xf32>
    %93 = tpu.matmul %92, %46, %cst_37 {dimension_numbers = #tpu.dot_dimension_numbers<[1], [0], [0], [1], [0, 0, 1, 1], [], []>} : vector<4x4xf32>, vector<4x4xf32>, vector<4x4xf32> -> vector<4x4xf32>
    %94 = arith.subf %92, %93 : vector<4x4xf32>
    %cst_38 = arith.constant dense<0.000000e+00> : vector<4x4xf32>
    %95 = tpu.matmul %92, %51, %cst_38 {dimension_numbers = #tpu.dot_dimension_numbers<[1], [0], [0], [1], [0, 0, 1, 1], [], []>} : vector<4x4xf32>, vector<4x4xf32>, vector<4x4xf32> -> vector<4x4xf32>
    %96 = arith.subf %92, %95 : vector<4x4xf32>
    %cst_39 = arith.constant dense<0.000000e+00> : vector<4x4xf32>
    %97 = tpu.matmul %34, %92, %cst_39 {dimension_numbers = #tpu.dot_dimension_numbers<[1], [0], [0], [1], [0, 0, 1, 1], [], []>} : vector<4x4xf32>, vector<4x4xf32>, vector<4x4xf32> -> vector<4x4xf32>
    %98 = arith.subf %92, %97 : vector<4x4xf32>
    %cst_40 = arith.constant dense<0.000000e+00> : vector<4x4xf32>
    %99 = tpu.matmul %39, %92, %cst_40 {dimension_numbers = #tpu.dot_dimension_numbers<[1], [0], [0], [1], [0, 0, 1, 1], [], []>} : vector<4x4xf32>, vector<4x4xf32>, vector<4x4xf32> -> vector<4x4xf32>
    %100 = arith.subf %92, %99 : vector<4x4xf32>
    %101 = arith.mulf %94, %94 : vector<4x4xf32>
    %102 = arith.mulf %96, %96 : vector<4x4xf32>
    %103 = arith.addf %101, %102 : vector<4x4xf32>
    %104 = arith.mulf %98, %98 : vector<4x4xf32>
    %105 = arith.addf %103, %104 : vector<4x4xf32>
    %106 = arith.mulf %100, %100 : vector<4x4xf32>
    %107 = arith.addf %105, %106 : vector<4x4xf32>
    %108 = arith.index_cast %c1_i32_26 : i32 to index
    %c0_41 = arith.constant 0 : index
    %c0_42 = arith.constant 0 : index
    %109 = vector.load %arg3[%108, %c0_41, %c0_42] : memref<2x4x4xf32, #tpu.memory_space<vmem>>, vector<1x4x4xf32>
    %110 = vector.shape_cast %109 : vector<1x4x4xf32> to vector<4x4xf32>
    %111 = vector.shape_cast %107 : vector<4x4xf32> to vector<1x4x4xf32>
    tpu.vector_store %arg3[%108, %c0_41, %c0_42], %111 {strides = array<i32>} : memref<2x4x4xf32, #tpu.memory_space<vmem>>, vector<1x4x4xf32>,
    %c2_i32 = arith.constant 2 : i32
    return
  }
  func.func @transform_0(%arg0: i32) -> (i32, i32, i32, i32) {
    %c0_i32 = arith.constant 0 : i32
    %c0_i32_0 = arith.constant 0 : i32
    %c0_i32_1 = arith.constant 0 : i32
    %c0_i32_2 = arith.constant 0 : i32
    return %arg0, %c0_i32, %c0_i32_0, %c0_i32_1 : i32, i32, i32, i32
  }
  func.func @transform_1(%arg0: i32) -> (i32, i32, i32, i32) {
    %c0_i32 = arith.constant 0 : i32
    %c0_i32_0 = arith.constant 0 : i32
    %c0_i32_1 = arith.constant 0 : i32
    %c0_i32_2 = arith.constant 0 : i32
    return %arg0, %c0_i32, %c0_i32_0, %c0_i32_1 : i32, i32, i32, i32
  }
  func.func @transform_2(%arg0: i32) -> (i32, i32, i32) {
    %c0_i32 = arith.constant 0 : i32
    %c0_i32_0 = arith.constant 0 : i32
    %c0_i32_1 = arith.constant 0 : i32
    return %arg0, %c0_i32, %c0_i32_0 : i32, i32, i32
  }
}

</mosaic_0001>

<llo_original>
// kernel: tpu_custom_call.1
$region0: #{tpu_custom_call.1}
  #allocation0 [shape = 'u32[]', space=smem, size = 0x4, offset = 0x4, fixed_abs, tag = 'smem constant byte address 0x4 - core index']
  #allocation1 [shape = 'u32[72,128]{1,0:T(1,128)}', space=vmem, size = 0x9000, scoped, tag = 'internal scratch']
  %s0 = inlined_call_operand.hbm [shape: f32[2,4,16,16], index: 0, kind: input, shape index: {}]
  %s1 = inlined_call_operand.hbm [shape: f32[2,4,16,16], index: 1, kind: input, shape index: {}]
  %s2 = inlined_call_operand.hbm [shape: f32[2,4,4], index: 2, kind: output, shape index: {}]
  %s3 = sld [smem:[#allocation0]]
  $region26: #{tpu_custom_call.1} parent=0
    _
  %s5 = ssub.s32 1, %s3
  %s6 = scalar_select 0, %s5, %s3
  $region1: #{tpu_custom_call.1} parent=0
    #allocation2 [shape = 'u8[65536]{0}', space=vmem, size = 0x10000, scoped, tag = 'input window, operand 0, single buffered']
    #allocation3 [shape = 's32[1]{0}', space=sflag, size = 0x4, scoped, tag = 'scoped memory for tpu_custom_call.1']
    #allocation4 [shape = 's32[1]{0}', space=sflag, size = 0x4, scoped, tag = 'scoped memory for tpu_custom_call.1']
    #allocation5 [shape = 'u8[65536]{0}', space=vmem, size = 0x10000, scoped, tag = 'input window, operand 1, single buffered']
    #allocation6 [shape = 's32[1]{0}', space=sflag, size = 0x4, scoped, tag = 'scoped memory for tpu_custom_call.1']
    #allocation7 [shape = 'u8[4096]{0}', space=vmem, size = 0x1000, scoped, tag = 'output window, operand 0, single buffered']
    %7 = vsyncpa [#allocation3], 0
    %8 = vsyncpa [#allocation6], 0
    %9 = vsyncpa [#allocation4], 0
    // Predicated region
    $region2: #{tpu_custom_call.1} parent=1 // pred_check
      _
    $region3: #{tpu_custom_call.1} parent=1 // pred_check_branch
      %11 = sbr.rel (0) target = $region5
    $region4: #{tpu_custom_call.1} parent=1 // pred_region
      %13 = vsyncadd [#allocation3], 0
      %s14 = sshll.u32 %s0, 4
      %s15 = int_to_ptr.hbm [resolvable:$true] %s14
      %s16 = sshll.u32 [#allocation2], 4
      %s17 = int_to_ptr.vmem [resolvable:$true] %s16
      %22 = dma.hbm_to_vmem [thread:$0]  %s15, 2048, %s17, [#allocation3], 128, 128, 8
    $region5: #{tpu_custom_call.1} parent=1 // pred_fallthru
      _
    // Predicated region
    $region6: #{tpu_custom_call.1} parent=1 // pred_check
      _
    $region7: #{tpu_custom_call.1} parent=1 // pred_check_branch
      %24 = sbr.rel (0) target = $region9
    $region8: #{tpu_custom_call.1} parent=1 // pred_region
      %26 = vsyncadd [#allocation6], 0
      %s27 = sshll.u32 %s1, 4
      %s28 = int_to_ptr.hbm [resolvable:$true] %s27
      %s29 = sshll.u32 [#allocation5], 4
      %s30 = int_to_ptr.vmem [resolvable:$true] %s29
      %35 = dma.hbm_to_vmem [thread:$0]  %s28, 2048, %s30, [#allocation6], 128, 128, 8
    $region9: #{tpu_custom_call.1} parent=1 // pred_fallthru
      _
    // Predicated region
    $region10: #{tpu_custom_call.1} parent=1 // pred_check
      _
    $region11: #{tpu_custom_call.1} parent=1 // pred_check_branch
      %37 = sbr.rel (0) target = $region13
    $region12: #{tpu_custom_call.1} parent=1 // pred_region
      %39 = dma.done [#allocation3], 2048
    $region13: #{tpu_custom_call.1} parent=1 // pred_fallthru
      _
    // Predicated region
    $region14: #{tpu_custom_call.1} parent=1 // pred_check
      _
    $region15: #{tpu_custom_call.1} parent=1 // pred_check_branch
      %41 = sbr.rel (0) target = $region17
    $region16: #{tpu_custom_call.1} parent=1 // pred_region
      %43 = dma.done [#allocation6], 2048
    $region17: #{tpu_custom_call.1} parent=1 // pred_fallthru
      _
    %v44 = vlaneseq
    %v45 = vshrl.u32 %v44, 7
    %v46 = vlaneseq
    %v47 = vand.u32 %v46, 127
    %v48 = vmul.u32 %v45, 4
    %vm49 = vcmp.ge.s32.totalorder %v47, %v48
    %v50 = vadd.s32 %v48, 4
    %vm51 = vcmp.lt.s32.totalorder %v47, %v50
    %vm52 = vmand %vm49, %vm51
    %v53 = vsel %vm52, 0.0625, 0.0
    %v54 = vadd.s32 %v45, 8
    %v55 = vmul.u32 %v47, 4
    %vm56 = vcmp.ge.s32.totalorder %v45, %v55
    %vm57 = vcmp.ge.s32.totalorder %v54, %v55
    %v58 = vadd.s32 %v55, 4
    %vm59 = vcmp.lt.s32.totalorder %v45, %v58
    %vm60 = vcmp.lt.s32.totalorder %v54, %v58
    %vm61 = vmand %vm56, %vm59
    %vm62 = vmand %vm57, %vm60
    %v63 = vsel %vm61, 0.25, 0.0
    %v64 = vsel %vm62, 0.25, 0.0
    %v65 = vsub.s32 %v45, 1
    %vm66 = vcmp.eq.s32.totalorder %v47, %v65
    %v67 = vsel %vm66, 1, 0
    %v68 = vcvt.s32.f32 %v67
    %v69 = vadd.s32 %v45, 1
    %vm70 = vcmp.eq.s32.totalorder %v47, %v69
    %v71 = vsel %vm70, 1, 0
    %v72 = vcvt.s32.f32 %v71
    %v73 = vsub.s32 %v47, 1
    %vm74 = vcmp.eq.s32.totalorder %v45, %v73
    %v75 = vsel %vm74, 1, 0
    %v76 = vcvt.s32.f32 %v75
    %v77 = vadd.s32 %v47, 1
    %vm78 = vcmp.eq.s32.totalorder %v45, %v77
    %v79 = vsel %vm78, 1, 0
    %v80 = vcvt.s32.f32 %v79
    %v81 = vld [vmem:[#allocation2] sm:$0xff]
    %v82 = vld [vmem:[#allocation2 + $0x8] sm:$0xff]
    %v83 = vld [vmem:[#allocation2 + $0x10] sm:$0xff]
    %v84 = vld [vmem:[#allocation2 + $0x18] sm:$0xff]
    %v85 = vld [vmem:[#allocation2 + $0x20] sm:$0xff]
    %v86 = vld [vmem:[#allocation2 + $0x28] sm:$0xff]
    %v87 = vld [vmem:[#allocation2 + $0x30] sm:$0xff]
    %v88 = vld [vmem:[#allocation2 + $0x38] sm:$0xff]
    %vm89 = vcmask 130048
    %v90 = vsel %vm89, %v81, 0.0
    %v91 = vsel %vm89, %v83, 0.0
    %v92 = vadd.f32 %v90, %v91
    %v93 = vsel %vm89, %v85, 0.0
    %v94 = vadd.f32 %v92, %v93
    %v95 = vsel %vm89, %v87, 0.0
    %v96 = vadd.f32 %v94, %v95
    %v97 = vsel %vm89, %v82, 0.0
    %v98 = vsel %vm89, %v84, 0.0
    %v99 = vadd.f32 %v97, %v98
    %v100 = vsel %vm89, %v86, 0.0
    %v101 = vadd.f32 %v99, %v100
    %v102 = vsel %vm89, %v88, 0.0
    %v103 = vadd.f32 %v101, %v102
    %v104 = vld [vmem:[#allocation5] sm:$0xff]
    %v105 = vld [vmem:[#allocation5 + $0x8] sm:$0xff]
    %v106 = vld [vmem:[#allocation5 + $0x10] sm:$0xff]
    %v107 = vld [vmem:[#allocation5 + $0x18] sm:$0xff]
    %v108 = vld [vmem:[#allocation5 + $0x20] sm:$0xff]
    %v109 = vld [vmem:[#allocation5 + $0x28] sm:$0xff]
    %v110 = vld [vmem:[#allocation5 + $0x30] sm:$0xff]
    %v111 = vld [vmem:[#allocation5 + $0x38] sm:$0xff]
    %v112 = vsel %vm89, %v104, 0.0
    %v113 = vsel %vm89, %v106, 0.0
    %v114 = vadd.f32 %v112, %v113
    %v115 = vsel %vm89, %v108, 0.0
    %v116 = vadd.f32 %v114, %v115
    %v117 = vsel %vm89, %v110, 0.0
    %v118 = vadd.f32 %v116, %v117
    %v119 = vsel %vm89, %v105, 0.0
    %v120 = vsel %vm89, %v107, 0.0
    %v121 = vadd.f32 %v119, %v120
    %v122 = vsel %vm89, %v109, 0.0
    %v123 = vadd.f32 %v121, %v122
    %v124 = vsel %vm89, %v111, 0.0
    %v125 = vadd.f32 %v123, %v124
    %v126 = vsub.f32 %v96, %v118
    %v127 = vsub.f32 %v103, %v125
    %v129 = vsel %vm89, %v53, 0
    %131 = vmatpush.msra.mxu0 0.0
    %132 = vmatpush.msra.mxu0 0.0
    %133 = vmatpush.msra.mxu0 0.0
    %134 = vmatpush.msra.mxu0 0.0
    %135 = vmatpush.msra.mxu0 0.0
    %136 = vmatpush.msra.mxu0 0.0
    %137 = vmatpush.msra.mxu0 0.0
    %138 = vmatpush.msra.mxu0 0.0
    %139 = vmatpush.msra.mxu0 0.0
    %140 = vmatpush.msra.mxu0 0.0
    %141 = vmatpush.msra.mxu0 0.0
    %142 = vmatpush.msra.mxu0 0.0
    %143 = vmatpush.msra.mxu0 0.0
    %144 = vmatpush.msra.mxu0 0.0
    %145 = vmatpush.msra.mxu0 %v127
    %146 = vmatpush.msra.mxu0 %v126
    %147 = vmatmul.f32.gmra.mxu0 %v129
    %v148 = vpop.f32.mrf.mxu0
    %v149 = vadd.f32 0.0, %v148
    %150 = vdwg.mxu0
    %v152 = vsel %vm89, %v149, 0
    %154 = vmatpush.msra.mxu0 0.0
    %155 = vmatpush.msra.mxu0 0.0
    %156 = vmatpush.msra.mxu0 0.0
    %157 = vmatpush.msra.mxu0 0.0
    %158 = vmatpush.msra.mxu0 0.0
    %159 = vmatpush.msra.mxu0 0.0
    %160 = vmatpush.msra.mxu0 0.0
    %161 = vmatpush.msra.mxu0 0.0
    %162 = vmatpush.msra.mxu0 0.0
    %163 = vmatpush.msra.mxu0 0.0
    %164 = vmatpush.msra.mxu0 0.0
    %165 = vmatpush.msra.mxu0 0.0
    %166 = vmatpush.msra.mxu0 0.0
    %167 = vmatpush.msra.mxu0 0.0
    %168 = vmatpush.msra.mxu0 %v64
    %169 = vmatpush.msra.mxu0 %v63
    %170 = vmatmul.f32.gmra.mxu0 %v152
    %v171 = vpop.f32.mrf.mxu0
    %v172 = vadd.f32 0.0, %v171
    %173 = vdwg.mxu0
    %vm174 = vcmask 31744
    %v176 = vsel %vm174, %v172, 0
    %vm178 = vcmask 1043456
    %v180 = vsel %vm178, %v76, 0
    %182 = vmatpush.msra.mxu0 0.0
    %183 = vmatpush.msra.mxu0 0.0
    %184 = vmatpush.msra.mxu0 0.0
    %185 = vmatpush.msra.mxu0 0.0
    %186 = vmatpush.msra.mxu0 0.0
    %187 = vmatpush.msra.mxu0 0.0
    %188 = vmatpush.msra.mxu0 0.0
    %189 = vmatpush.msra.mxu0 0.0
    %190 = vmatpush.msra.mxu0 0.0
    %191 = vmatpush.msra.mxu0 0.0
    %192 = vmatpush.msra.mxu0 0.0
    %193 = vmatpush.msra.mxu0 0.0
    %194 = vmatpush.msra.mxu0 0.0
    %195 = vmatpush.msra.mxu0 0.0
    %196 = vmatpush.msra.mxu0 0.0
    %197 = vmatpush.msra.mxu0 %v180
    %198 = vmatmul.f32.gmra.mxu0 %v176
    %v199 = vpop.f32.mrf.mxu0
    %v200 = vadd.f32 0.0, %v199
    %201 = vdwg.mxu0
    %v202 = vsub.f32 %v172, %v200
    %v204 = vsel %vm178, %v80, 0
    %206 = vmatpush.msra.mxu0 0.0
    %207 = vmatpush.msra.mxu0 0.0
    %208 = vmatpush.msra.mxu0 0.0
    %209 = vmatpush.msra.mxu0 0.0
    %210 = vmatpush.msra.mxu0 0.0
    %211 = vmatpush.msra.mxu0 0.0
    %212 = vmatpush.msra.mxu0 0.0
    %213 = vmatpush.msra.mxu0 0.0
    %214 = vmatpush.msra.mxu0 0.0
    %215 = vmatpush.msra.mxu0 0.0
    %216 = vmatpush.msra.mxu0 0.0
    %217 = vmatpush.msra.mxu0 0.0
    %218 = vmatpush.msra.mxu0 0.0
    %219 = vmatpush.msra.mxu0 0.0
    %220 = vmatpush.msra.mxu0 0.0
    %221 = vmatpush.msra.mxu0 %v204
    %222 = vmatmul.f32.gmra.mxu0 %v176
    %v223 = vpop.f32.mrf.mxu0
    %v224 = vadd.f32 0.0, %v223
    %225 = vdwg.mxu0
    %v226 = vsub.f32 %v172, %v224
    %v228 = vsel %vm174, %v68, 0
    %v230 = vsel %vm178, %v172, 0
    %232 = vmatpush.msra.mxu0 0.0
    %233 = vmatpush.msra.mxu0 0.0
    %234 = vmatpush.msra.mxu0 0.0
    %235 = vmatpush.msra.mxu0 0.0
    %236 = vmatpush.msra.mxu0 0.0
    %237 = vmatpush.msra.mxu0 0.0
    %238 = vmatpush.msra.mxu0 0.0
    %239 = vmatpush.msra.mxu0 0.0
    %240 = vmatpush.msra.mxu0 0.0
    %241 = vmatpush.msra.mxu0 0.0
    %242 = vmatpush.msra.mxu0 0.0
    %243 = vmatpush.msra.mxu0 0.0
    %244 = vmatpush.msra.mxu0 0.0
    %245 = vmatpush.msra.mxu0 0.0
    %246 = vmatpush.msra.mxu0 0.0
    %247 = vmatpush.msra.mxu0 %v230
    %248 = vmatmul.f32.gmra.mxu0 %v228
    %v249 = vpop.f32.mrf.mxu0
    %v250 = vadd.f32 0.0, %v249
    %251 = vdwg.mxu0
    %v252 = vsub.f32 %v172, %v250
    %v254 = vsel %vm174, %v72, 0
    %256 = vmatpush.msra.mxu0 0.0
    %257 = vmatpush.msra.mxu0 0.0
    %258 = vmatpush.msra.mxu0 0.0
    %259 = vmatpush.msra.mxu0 0.0
    %260 = vmatpush.msra.mxu0 0.0
    %261 = vmatpush.msra.mxu0 0.0
    %262 = vmatpush.msra.mxu0 0.0
    %263 = vmatpush.msra.mxu0 0.0
    %264 = vmatpush.msra.mxu0 0.0
    %265 = vmatpush.msra.mxu0 0.0
    %266 = vmatpush.msra.mxu0 0.0
    %267 = vmatpush.msra.mxu0 0.0
    %268 = vmatpush.msra.mxu0 0.0
    %269 = vmatpush.msra.mxu0 0.0
    %270 = vmatpush.msra.mxu0 0.0
    %271 = vmatpush.msra.mxu0 %v230
    %272 = vmatmul.f32.gmra.mxu0 %v254
    %v273 = vpop.f32.mrf.mxu0
    %v274 = vadd.f32 0.0, %v273
    %275 = vdwg.mxu0
    %v276 = vsub.f32 %v172, %v274
    %v277 = vmul.f32 %v202, %v202
    %v278 = vmul.f32 %v226, %v226
    %v279 = vadd.f32 %v277, %v278
    %v280 = vmul.f32 %v252, %v252
    %v281 = vadd.f32 %v279, %v280
    %v282 = vmul.f32 %v276, %v276
    %v283 = vadd.f32 %v281, %v282
    %vm284 = vcmask 27648
    %285 = vst.msk [vmem:[#allocation7] sm:$0xf] %vm284, %v283
    %s286 = scalar_lea.vmem [#allocation2], 64
    %v287 = vld [vmem:[%s286] sm:$0xff]
    %v288 = vld [vmem:[%s286 + $0x8] sm:$0xff]
    %v289 = vld [vmem:[%s286 + $0x10] sm:$0xff]
    %v290 = vld [vmem:[%s286 + $0x18] sm:$0xff]
    %v291 = vld [vmem:[%s286 + $0x20] sm:$0xff]
    %v292 = vld [vmem:[%s286 + $0x28] sm:$0xff]
    %v293 = vld [vmem:[%s286 + $0x30] sm:$0xff]
    %v294 = vld [vmem:[%s286 + $0x38] sm:$0xff]
    %v295 = vsel %vm89, %v287, 0.0
    %v296 = vsel %vm89, %v289, 0.0
    %v297 = vadd.f32 %v295, %v296
    %v298 = vsel %vm89, %v291, 0.0
    %v299 = vadd.f32 %v297, %v298
    %v300 = vsel %vm89, %v293, 0.0
    %v301 = vadd.f32 %v299, %v300
    %v302 = vsel %vm89, %v288, 0.0
    %v303 = vsel %vm89, %v290, 0.0
    %v304 = vadd.f32 %v302, %v303
    %v305 = vsel %vm89, %v292, 0.0
    %v306 = vadd.f32 %v304, %v305
    %v307 = vsel %vm89, %v294, 0.0
    %v308 = vadd.f32 %v306, %v307
    %s309 = scalar_lea.vmem [#allocation5], 64
    %v310 = vld [vmem:[%s309] sm:$0xff]
    %v311 = vld [vmem:[%s309 + $0x8] sm:$0xff]
    %v312 = vld [vmem:[%s309 + $0x10] sm:$0xff]
    %v313 = vld [vmem:[%s309 + $0x18] sm:$0xff]
    %v314 = vld [vmem:[%s309 + $0x20] sm:$0xff]
    %v315 = vld [vmem:[%s309 + $0x28] sm:$0xff]
    %v316 = vld [vmem:[%s309 + $0x30] sm:$0xff]
    %v317 = vld [vmem:[%s309 + $0x38] sm:$0xff]
    %v318 = vsel %vm89, %v310, 0.0
    %v319 = vsel %vm89, %v312, 0.0
    %v320 = vadd.f32 %v318, %v319
    %v321 = vsel %vm89, %v314, 0.0
    %v322 = vadd.f32 %v320, %v321
    %v323 = vsel %vm89, %v316, 0.0
    %v324 = vadd.f32 %v322, %v323
    %v325 = vsel %vm89, %v311, 0.0
    %v326 = vsel %vm89, %v313, 0.0
    %v327 = vadd.f32 %v325, %v326
    %v328 = vsel %vm89, %v315, 0.0
    %v329 = vadd.f32 %v327, %v328
    %v330 = vsel %vm89, %v317, 0.0
    %v331 = vadd.f32 %v329, %v330
    %v332 = vsub.f32 %v301, %v324
    %v333 = vsub.f32 %v308, %v331
    %334 = vmatpush.msra.mxu0 0.0
    %335 = vmatpush.msra.mxu0 0.0
    %336 = vmatpush.msra.mxu0 0.0
    %337 = vmatpush.msra.mxu0 0.0
    %338 = vmatpush.msra.mxu0 0.0
    %339 = vmatpush.msra.mxu0 0.0
    %340 = vmatpush.msra.mxu0 0.0
    %341 = vmatpush.msra.mxu0 0.0
    %342 = vmatpush.msra.mxu0 0.0
    %343 = vmatpush.msra.mxu0 0.0
    %344 = vmatpush.msra.mxu0 0.0
    %345 = vmatpush.msra.mxu0 0.0
    %346 = vmatpush.msra.mxu0 0.0
    %347 = vmatpush.msra.mxu0 0.0
    %348 = vmatpush.msra.mxu0 %v333
    %349 = vmatpush.msra.mxu0 %v332
    %350 = vmatmul.f32.gmra.mxu0 %v129
    %v351 = vpop.f32.mrf.mxu0
    %v352 = vadd.f32 0.0, %v351
    %353 = vdwg.mxu0
    %v355 = vsel %vm89, %v352, 0
    %357 = vmatpush.msra.mxu0 0.0
    %358 = vmatpush.msra.mxu0 0.0
    %359 = vmatpush.msra.mxu0 0.0
    %360 = vmatpush.msra.mxu0 0.0
    %361 = vmatpush.msra.mxu0 0.0
    %362 = vmatpush.msra.mxu0 0.0
    %363 = vmatpush.msra.mxu0 0.0
    %364 = vmatpush.msra.mxu0 0.0
    %365 = vmatpush.msra.mxu0 0.0
    %366 = vmatpush.msra.mxu0 0.0
    %367 = vmatpush.msra.mxu0 0.0
    %368 = vmatpush.msra.mxu0 0.0
    %369 = vmatpush.msra.mxu0 0.0
    %370 = vmatpush.msra.mxu0 0.0
    %371 = vmatpush.msra.mxu0 %v64
    %372 = vmatpush.msra.mxu0 %v63
    %373 = vmatmul.f32.gmra.mxu0 %v355
    %v374 = vpop.f32.mrf.mxu0
    %v375 = vadd.f32 0.0, %v374
    %376 = vdwg.mxu0
    %v378 = vsel %vm174, %v375, 0
    %380 = vmatpush.msra.mxu0 0.0
    %381 = vmatpush.msra.mxu0 0.0
    %382 = vmatpush.msra.mxu0 0.0
    %383 = vmatpush.msra.mxu0 0.0
    %384 = vmatpush.msra.mxu0 0.0
    %385 = vmatpush.msra.mxu0 0.0
    %386 = vmatpush.msra.mxu0 0.0
    %387 = vmatpush.msra.mxu0 0.0
    %388 = vmatpush.msra.mxu0 0.0
    %389 = vmatpush.msra.mxu0 0.0
    %390 = vmatpush.msra.mxu0 0.0
    %391 = vmatpush.msra.mxu0 0.0
    %392 = vmatpush.msra.mxu0 0.0
    %393 = vmatpush.msra.mxu0 0.0
    %394 = vmatpush.msra.mxu0 0.0
    %395 = vmatpush.msra.mxu0 %v180
    %396 = vmatmul.f32.gmra.mxu0 %v378
    %v397 = vpop.f32.mrf.mxu0
    %v398 = vadd.f32 0.0, %v397
    %399 = vdwg.mxu0
    %v400 = vsub.f32 %v375, %v398
    %401 = vmatpush.msra.mxu0 0.0
    %402 = vmatpush.msra.mxu0 0.0
    %403 = vmatpush.msra.mxu0 0.0
    %404 = vmatpush.msra.mxu0 0.0
    %405 = vmatpush.msra.mxu0 0.0
    %406 = vmatpush.msra.mxu0 0.0
    %407 = vmatpush.msra.mxu0 0.0
    %408 = vmatpush.msra.mxu0 0.0
    %409 = vmatpush.msra.mxu0 0.0
    %410 = vmatpush.msra.mxu0 0.0
    %411 = vmatpush.msra.mxu0 0.0
    %412 = vmatpush.msra.mxu0 0.0
    %413 = vmatpush.msra.mxu0 0.0
    %414 = vmatpush.msra.mxu0 0.0
    %415 = vmatpush.msra.mxu0 0.0
    %416 = vmatpush.msra.mxu0 %v204
    %417 = vmatmul.f32.gmra.mxu0 %v378
    %v418 = vpop.f32.mrf.mxu0
    %v419 = vadd.f32 0.0, %v418
    %420 = vdwg.mxu0
    %v421 = vsub.f32 %v375, %v419
    %v422 = vsel %vm178, %v375, 0
    %424 = vmatpush.msra.mxu0 0.0
    %425 = vmatpush.msra.mxu0 0.0
    %426 = vmatpush.msra.mxu0 0.0
    %427 = vmatpush.msra.mxu0 0.0
    %428 = vmatpush.msra.mxu0 0.0
    %429 = vmatpush.msra.mxu0 0.0
    %430 = vmatpush.msra.mxu0 0.0
    %431 = vmatpush.msra.mxu0 0.0
    %432 = vmatpush.msra.mxu0 0.0
    %433 = vmatpush.msra.mxu0 0.0
    %434 = vmatpush.msra.mxu0 0.0
    %435 = vmatpush.msra.mxu0 0.0
    %436 = vmatpush.msra.mxu0 0.0
    %437 = vmatpush.msra.mxu0 0.0
    %438 = vmatpush.msra.mxu0 0.0
    %439 = vmatpush.msra.mxu0 %v422
    %440 = vmatmul.f32.gmra.mxu0 %v228
    %v441 = vpop.f32.mrf.mxu0
    %v442 = vadd.f32 0.0, %v441
    %443 = vdwg.mxu0
    %v444 = vsub.f32 %v375, %v442
    %445 = vmatpush.msra.mxu0 0.0
    %446 = vmatpush.msra.mxu0 0.0
    %447 = vmatpush.msra.mxu0 0.0
    %448 = vmatpush.msra.mxu0 0.0
    %449 = vmatpush.msra.mxu0 0.0
    %450 = vmatpush.msra.mxu0 0.0
    %451 = vmatpush.msra.mxu0 0.0
    %452 = vmatpush.msra.mxu0 0.0
    %453 = vmatpush.msra.mxu0 0.0
    %454 = vmatpush.msra.mxu0 0.0
    %455 = vmatpush.msra.mxu0 0.0
    %456 = vmatpush.msra.mxu0 0.0
    %457 = vmatpush.msra.mxu0 0.0
    %458 = vmatpush.msra.mxu0 0.0
    %459 = vmatpush.msra.mxu0 0.0
    %460 = vmatpush.msra.mxu0 %v422
    %461 = vmatmul.f32.gmra.mxu0 %v254
    %v462 = vpop.f32.mrf.mxu0
    %v463 = vadd.f32 0.0, %v462
    %464 = vdwg.mxu0
    %v465 = vsub.f32 %v375, %v463
    %v466 = vmul.f32 %v400, %v400
    %v467 = vmul.f32 %v421, %v421
    %v468 = vadd.f32 %v466, %v467
    %v469 = vmul.f32 %v444, %v444
    %v470 = vadd.f32 %v468, %v469
    %v471 = vmul.f32 %v465, %v465
    %v472 = vadd.f32 %v470, %v471
    %s473 = scalar_lea.vmem [#allocation7], 4
    %474 = vst.msk [vmem:[%s473] sm:$0xf] %vm284, %v472
    // Predicated region
    $region18: #{tpu_custom_call.1} parent=1 // pred_check
      _
    $region19: #{tpu_custom_call.1} parent=1 // pred_check_branch
      %476 = sbr.rel (0) target = $region21
    $region20: #{tpu_custom_call.1} parent=1 // pred_region
      %478 = vsyncadd [#allocation4], 0
      %s479 = sshll.u32 [#allocation7], 4
      %s480 = int_to_ptr.vmem [resolvable:$true] %s479
      %s481 = sshll.u32 %s2, 4
      %s482 = int_to_ptr.hbm [resolvable:$true] %s481
      %487 = dma.vmem_to_hbm [thread:$0]  %s480, 128, %s482, [#allocation4], 64, 64, 4
    $region21: #{tpu_custom_call.1} parent=1 // pred_fallthru
      _
    // Predicated region
    $region22: #{tpu_custom_call.1} parent=1 // pred_check
      _
    $region23: #{tpu_custom_call.1} parent=1 // pred_check_branch
      %489 = sbr.rel (0) target = $region25
    $region24: #{tpu_custom_call.1} parent=1 // pred_region
      %491 = dma.done [#allocation4], 128
    $region25: #{tpu_custom_call.1} parent=1 // pred_fallthru
      _
    %492 = vsyncpa [#allocation3], 1
    %493 = vsyncpa [#allocation6], 1
    %494 = vsyncpa [#allocation4], 1

</llo_original>
